<compile_context>
chip_gen: v5e
topology: v5e:2x2
jax: 0.10.0
libtpu: 0.0.40
codegen_flags: <defaults>
</compile_context>

<pallas_src>
import functools
import math

import jax
import jax.numpy as jnp
from jax import lax
from jax.experimental import pallas as pl
from jax.experimental.pallas import tpu as pltpu


def _repeat_linear_kernel(x_ref, w_ref, wbig_ref, b_ref, o_ref, acc_ref,
                          *, flat, tf):
    # x_ref   : (TB, TF)   lane-dense input tile (TF = ts * D)
    # w_ref   : (1, TF)    self.w repeated ts times (resident)
    # wbig_ref: (TF, OUT)  (Linear W^T / num_steps) stacked ts times (resident, f32)
    # b_ref   : (1, OUT)   Linear bias (resident, f32)
    # o_ref   : (TB, OUT)  output block (same block across the step axis)
    # acc_ref : (TB, OUT)  f32 accumulator scratch
    s = pl.program_id(1)
    last = pl.num_programs(1) - 1

    @pl.when(s == 0)
    def _init():
        acc_ref[...] = jnp.zeros_like(acc_ref)

    act = jnp.maximum(x_ref[...] * w_ref[...], 0.0)      # relu(w * x), input dtype
    wbig = wbig_ref[...].astype(act.dtype)               # no-op when both f32

    if flat % tf != 0:
        # Only the final step tile is partial; pay the mask only there.
        @pl.when(s != last)
        def _acc_full():
            acc_ref[...] += jnp.dot(act, wbig,
                                    preferred_element_type=jnp.float32)

        @pl.when(s == last)
        def _acc_masked():
            col = lax.broadcasted_iota(jnp.int32, act.shape, 1)
            valid = (s * tf + col) < flat
            masked = jnp.where(valid, act, 0.0).astype(act.dtype)
            acc_ref[...] += jnp.dot(masked, wbig,
                                    preferred_element_type=jnp.float32)
    else:
        acc_ref[...] += jnp.dot(act, wbig, preferred_element_type=jnp.float32)

    @pl.when(s == last)
    def _finish():
        o_ref[...] = (acc_ref[...] + b_ref[...]).astype(o_ref.dtype)


def _vmem_capacity_bytes():
    try:
        return int(pltpu.get_tpu_info().vmem_capacity_bytes)
    except Exception:
        return 64 * 1024 * 1024        # conservative fallback (v7x-sized)


def prepare_repeat_linear_params(w, lin_w, lin_b, num_steps):
    """One-time parameter prep (NOT per forward).

    w:     (D,)     per-feature vector (self.w)
    lin_w: (OUT, D) nn.Linear weight
    lin_b: (OUT,)   nn.Linear bias
    Returns (w2 (1,D), lw_t_scaled (D,OUT) f32 with 1/num_steps folded in,
             b2 (1,OUT) f32).
    """
    D = w.shape[0]
    OUT = lin_w.shape[0]
    w2 = w.reshape(1, D)
    lw_t_scaled = lin_w.T.astype(jnp.float32) / jnp.float32(num_steps)
    b2 = lin_b.reshape(1, OUT).astype(jnp.float32)
    return w2, lw_t_scaled, b2


def repeat_linear(x, w2, lw_t_scaled, b2, *, tb=None, ts=None, max_flat=8192):
    """x: (B,S,D); w2: (1,D); lw_t_scaled: (D,OUT); b2: (1,OUT) -> (B,OUT)."""
    B, S, D = x.shape
    OUT = lw_t_scaled.shape[1]
    flat = S * D
    itemsize = jnp.dtype(x.dtype).itemsize
    out_pad = ((OUT + 127) // 128) * 128

    # ---- step-tile size: the x block's minor (lane) dim is ts*D, which must be
    # a multiple of 128 unless it spans the whole flat axis (ts == S).
    q = max(1, 128 // math.gcd(D, 128))
    if ts is None:
        if flat <= max_flat:
            ts = S                                      # single step tile, no mask
        else:
            ts_cap = max(q, ((max_flat // D) // q) * q)
            ts = ts_cap                                 # masked last tile if needed
            for cand in range(ts_cap, max(q, ts_cap // 2) - 1, -q):
                if S % cand == 0:
                    ts = cand                           # divides S -> no masking
                    break
    else:
        ts = int(min(ts, S))
        if ts < S and (ts * D) % 128 != 0:
            ts = min(S, ((ts + q - 1) // q) * q)        # snap to the (.,128) rule
    tf = ts * D if ts < S else flat

    # ---- tiny lane-dense parameter tiles (one-time XLA ops, resident in VMEM) --
    w_tiled = jnp.tile(w2, (1, ts)).astype(x.dtype)                 # (1, tf)
    w_big = jnp.tile(lw_t_scaled.astype(jnp.float32), (ts, 1))      # (tf, OUT)

    # ---- generation-aware, padding-aware VMEM budget --------------------------
    vmem_cap = _vmem_capacity_bytes()
    vmem_limit = max(32 << 20, min(vmem_cap - (8 << 20), 112 << 20))
    resident = (2 * 8 * tf * itemsize          # w_tiled: (1,tf) sublane-padded, 2 bufs
                + 2 * tf * out_pad * 4         # w_big: OUT lane-padded, 2 bufs
                + 2 * 8 * out_pad * 4)         # bias
    if tb is None:
        per_row = (2 * tf * itemsize           # x tile rows, double-buffered
                   + 2 * out_pad * itemsize    # output block rows, double-buffered
                   + out_pad * 4)              # f32 accumulator rows
        budget = max(vmem_limit - resident - (4 << 20), 2 << 20)
        tb = int(budget // per_row)
        tb = max(8, min(2048, (tb // 8) * 8))
        if B >= 32:
            # keep >= 4 batch tiles so the "parallel" axis can feed both v7x cores
            tb = min(tb, max(8, ((-(-B // 4) + 7) // 8) * 8))
    tb = min(tb, B)
    if tb < B:
        tb = max(8, (tb // 8) * 8)             # sublane-aligned partial batch tiles

    grid = (pl.cdiv(B, tb), pl.cdiv(flat, tf))
    kernel = functools.partial(_repeat_linear_kernel, flat=flat, tf=tf)

    flops = 2 * B * flat + 2 * B * flat * OUT
    bytes_accessed = int(B * flat * itemsize + w_tiled.size * itemsize
                         + w_big.size * 4 + b2.size * 4 + B * OUT * itemsize)

    return pl.pallas_call(
        kernel,
        out_shape=jax.ShapeDtypeStruct((B, OUT), x.dtype),
        grid=grid,
        in_specs=[
            pl.BlockSpec((tb, tf), lambda i, s: (i, s)),      # x (pipelined)
            pl.BlockSpec((1, tf), lambda i, s: (0, 0)),       # w tiled (resident)
            pl.BlockSpec((tf, OUT), lambda i, s: (0, 0)),     # W^T/S stacked (resident)
            pl.BlockSpec((1, OUT), lambda i, s: (0, 0)),      # bias (resident)
        ],
        out_specs=pl.BlockSpec((tb, OUT), lambda i, s: (i, 0)),
        scratch_shapes=[pltpu.VMEM((tb, OUT), jnp.float32)],
        compiler_params=pltpu.CompilerParams(
            dimension_semantics=("parallel", "arbitrary"),
            vmem_limit_bytes=int(vmem_limit)),
        cost_estimate=pl.CostEstimate(
            flops=flops, transcendentals=0, bytes_accessed=bytes_accessed),
    )(x.reshape(B, flat), w_tiled, w_big, b2)


def repeat_linear_ref(x, w, lin_w, lin_b):
    """Pure-JAX reference matching the PyTorch forward."""
    act = jnp.maximum(x * w[None, None, :], 0.0)
    m = jnp.mean(act, axis=1)
    return m @ lin_w.T + lin_b[None, :]


if __name__ == "__main__":
    # Shapes consistent with the module: in_dim=32, out_dim=16, num_steps=8, batch=2.
    B, S, D, OUT = 2, 8, 32, 16

    key = jax.random.PRNGKey(0)
    kx, kw, klw, klb = jax.random.split(key, 4)

    x = jax.random.normal(kx, (B, S, D), dtype=jnp.float32)
    w = jax.random.normal(kw, (D,), dtype=jnp.float32)            # self.w
    k = 1.0 / jnp.sqrt(jnp.float32(D))
    lin_w = jax.random.uniform(klw, (OUT, D), minval=-k, maxval=k, dtype=jnp.float32)
    lin_b = jax.random.uniform(klb, (OUT,), minval=-k, maxval=k, dtype=jnp.float32)

    # One-time parameter prep (mean's 1/S folded into the f32 Linear weight).
    w2, lw_t, b2 = prepare_repeat_linear_params(w, lin_w, lin_b, num_steps=S)

    out = jax.block_until_ready(repeat_linear(x, w2, lw_t, b2))
    ref = repeat_linear_ref(x, w, lin_w, lin_b)
    assert out.shape == (B, OUT)
    assert jnp.allclose(out, ref, atol=1e-5, rtol=1e-5), "mismatch vs reference (small)"

    # Second case: batch tiling with a partial last batch tile AND step tiling
    # with a masked partial last step tile.
    B2, S2 = 36, 40
    x2 = jax.random.normal(jax.random.PRNGKey(1), (B2, S2, D), dtype=jnp.float32)
    w2b, lw2, b2b = prepare_repeat_linear_params(w, lin_w, lin_b, num_steps=S2)
    out2 = jax.block_until_ready(repeat_linear(x2, w2b, lw2, b2b, tb=16, ts=16))
    ref2 = repeat_linear_ref(x2, w, lin_w, lin_b)
    assert out2.shape == (B2, OUT)
    assert jnp.allclose(out2, ref2, atol=1e-5, rtol=1e-5), "mismatch vs reference (tiled)"

    print("KERNEL_OK")
</pallas_src>

<mosaic_0001>
module attributes {stable_mosaic.version = 11 : i64} {
  func.func @_repeat_linear_kernel(%arg0: i32, %arg1: i32, %arg2: memref<2x256xf32, #tpu.memory_space<vmem>>, %arg3: memref<1x256xf32, #tpu.memory_space<vmem>>, %arg4: memref<256x16xf32, #tpu.memory_space<vmem>>, %arg5: memref<1x16xf32, #tpu.memory_space<vmem>>, %arg6: memref<2x16xf32, #tpu.memory_space<vmem>>, %arg7: memref<2x16xf32, #tpu.memory_space<vmem>>) attributes {dimension_semantics = [#tpu.dimension_semantics<parallel>, #tpu.dimension_semantics<arbitrary>], iteration_bounds = array<i64: 1, 1>, scalar_prefetch = 0 : i64, scratch_operands = 1 : i64, tpu.core_type = #tpu.core_type<tc>, window_params = [{transform_indices = @transform_0, window_bounds = array<i64: 2, 256>}, {pipeline_mode = #tpu.pipeline_mode<synchronous>, transform_indices = @transform_1, window_bounds = array<i64: 1, 256>}, {pipeline_mode = #tpu.pipeline_mode<synchronous>, transform_indices = @transform_2, window_bounds = array<i64: 256, 16>}, {pipeline_mode = #tpu.pipeline_mode<synchronous>, transform_indices = @transform_3, window_bounds = array<i64: 1, 16>}, {transform_indices = @transform_4, window_bounds = array<i64: 2, 16>}]} {
    %c0_i32 = arith.constant 0 : i32
    %0 = arith.cmpi eq, %arg1, %c0_i32 : i32
    %1 = arith.extui %0 : i1 to i32
    %c0_i32_0 = arith.constant 0 : i32
    %2 = arith.cmpi ne, %1, %c0_i32_0 : i32
    scf.if %2 {
      %cst_13 = arith.constant 0.000000e+00 : f32
      %17 = vector.broadcast %cst_13 : f32 to vector<2x16xf32>
      %c0_14 = arith.constant 0 : index
      %c0_15 = arith.constant 0 : index
      %18 = vector.load %arg7[%c0_14, %c0_15] : memref<2x16xf32, #tpu.memory_space<vmem>>, vector<2x16xf32>
      tpu.vector_store %arg7[%c0_14, %c0_15], %17 {strides = array<i32>} : memref<2x16xf32, #tpu.memory_space<vmem>>, vector<2x16xf32>,
    } else {
    }
    %c0 = arith.constant 0 : index
    %c0_1 = arith.constant 0 : index
    %3 = vector.load %arg2[%c0, %c0_1] : memref<2x256xf32, #tpu.memory_space<vmem>>, vector<2x256xf32>
    %c0_2 = arith.constant 0 : index
    %c0_3 = arith.constant 0 : index
    %4 = vector.load %arg3[%c0_2, %c0_3] : memref<1x256xf32, #tpu.memory_space<vmem>>, vector<1x256xf32>
    %5 = vector.broadcast %4 : vector<1x256xf32> to vector<2x256xf32>
    %6 = arith.mulf %3, %5 : vector<2x256xf32>
    %cst = arith.constant 0.000000e+00 : f32
    %7 = vector.broadcast %cst : f32 to vector<2x256xf32>
    %8 = arith.maximumf %6, %7 : vector<2x256xf32>
    %c0_4 = arith.constant 0 : index
    %c0_5 = arith.constant 0 : index
    %9 = vector.load %arg4[%c0_4, %c0_5] : memref<256x16xf32, #tpu.memory_space<vmem>>, vector<256x16xf32>
    %c0_6 = arith.constant 0 : index
    %c0_7 = arith.constant 0 : index
    %10 = vector.load %arg7[%c0_6, %c0_7] : memref<2x16xf32, #tpu.memory_space<vmem>>, vector<2x16xf32>
    %cst_8 = arith.constant dense<0.000000e+00> : vector<2x16xf32>
    %11 = tpu.matmul %8, %9, %cst_8 {dimension_numbers = #tpu.dot_dimension_numbers<[1], [0], [0], [1], [0, 0, 1, 1], [], []>} : vector<2x256xf32>, vector<256x16xf32>, vector<2x16xf32> -> vector<2x16xf32>
    %12 = arith.addf %10, %11 : vector<2x16xf32>
    %c0_9 = arith.constant 0 : index
    %c0_10 = arith.constant 0 : index
    %13 = vector.load %arg7[%c0_9, %c0_10] : memref<2x16xf32, #tpu.memory_space<vmem>>, vector<2x16xf32>
    tpu.vector_store %arg7[%c0_9, %c0_10], %12 {strides = array<i32>} : memref<2x16xf32, #tpu.memory_space<vmem>>, vector<2x16xf32>,
    %c0_i32_11 = arith.constant 0 : i32
    %14 = arith.cmpi eq, %arg1, %c0_i32_11 : i32
    %15 = arith.extui %14 : i1 to i32
    %c0_i32_12 = arith.constant 0 : i32
    %16 = arith.cmpi ne, %15, %c0_i32_12 : i32
    scf.if %16 {
      %c0_13 = arith.constant 0 : index
      %c0_14 = arith.constant 0 : index
      %17 = vector.load %arg7[%c0_13, %c0_14] : memref<2x16xf32, #tpu.memory_space<vmem>>, vector<2x16xf32>
      %c0_15 = arith.constant 0 : index
      %c0_16 = arith.constant 0 : index
      %18 = vector.load %arg5[%c0_15, %c0_16] : memref<1x16xf32, #tpu.memory_space<vmem>>, vector<1x16xf32>
      %19 = vector.broadcast %18 : vector<1x16xf32> to vector<2x16xf32>
      %20 = arith.addf %17, %19 : vector<2x16xf32>
      %c0_17 = arith.constant 0 : index
      %c0_18 = arith.constant 0 : index
      %21 = vector.load %arg6[%c0_17, %c0_18] : memref<2x16xf32, #tpu.memory_space<vmem>>, vector<2x16xf32>
      tpu.vector_store %arg6[%c0_17, %c0_18], %20 {strides = array<i32>} : memref<2x16xf32, #tpu.memory_space<vmem>>, vector<2x16xf32>,
    } else {
    }
    return
  }
  func.func @transform_0(%arg0: i32, %arg1: i32) -> (i32, i32) {
    %c0_i32 = arith.constant 0 : i32
    return %arg0, %arg1 : i32, i32
  }
  func.func @transform_1(%arg0: i32, %arg1: i32) -> (i32, i32) {
    %c0_i32 = arith.constant 0 : i32
    %c0_i32_0 = arith.constant 0 : i32
    %c0_i32_1 = arith.constant 0 : i32
    return %c0_i32, %c0_i32_0 : i32, i32
  }
  func.func @transform_2(%arg0: i32, %arg1: i32) -> (i32, i32) {
    %c0_i32 = arith.constant 0 : i32
    %c0_i32_0 = arith.constant 0 : i32
    %c0_i32_1 = arith.constant 0 : i32
    return %c0_i32, %c0_i32_0 : i32, i32
  }
  func.func @transform_3(%arg0: i32, %arg1: i32) -> (i32, i32) {
    %c0_i32 = arith.constant 0 : i32
    %c0_i32_0 = arith.constant 0 : i32
    %c0_i32_1 = arith.constant 0 : i32
    return %c0_i32, %c0_i32_0 : i32, i32
  }
  func.func @transform_4(%arg0: i32, %arg1: i32) -> (i32, i32) {
    %c0_i32 = arith.constant 0 : i32
    %c0_i32_0 = arith.constant 0 : i32
    return %arg0, %c0_i32 : i32, i32
  }
}

</mosaic_0001>

<llo_original>
// kernel: tpu_custom_call.1
$region0: #{tpu_custom_call.1}
  #allocation0 [shape = 'u32[]', space=smem, size = 0x4, offset = 0x4, fixed_abs, tag = 'smem constant byte address 0x4 - core index']
  #allocation1 [shape = 'u32[72,128]{1,0:T(1,128)}', space=vmem, size = 0x9000, scoped, tag = 'internal scratch']
  #allocation2 [shape = 'f32[2,16]{1,0:T(2,128)}', space=vmem, size = 0x400, scoped, tag = 'scratch operand']
  %s0 = inlined_call_operand.vmem [shape: f32[2,256], index: 0, kind: input, shape index: {}]
  %s1 = inlined_call_operand.vmem [shape: f32[1,256], index: 1, kind: input, shape index: {}]
  %s2 = inlined_call_operand.vmem [shape: f32[256,16], index: 2, kind: input, shape index: {}]
  %s3 = inlined_call_operand.vmem [shape: f32[1,16], index: 3, kind: input, shape index: {}]
  %s4 = inlined_call_operand.hbm [shape: f32[2,16], index: 4, kind: output, shape index: {}]
  %s5 = sld [smem:[#allocation0]]
  $region34: #{tpu_custom_call.1} parent=0
    _
  %s7 = ssub.s32 1, %s5
  %s8 = scalar_select 0, %s7, %s5
  $region1: #{tpu_custom_call.1} parent=0
    #allocation3 [shape = 'u8[1024]{0}', space=vmem, size = 0x400, scoped, tag = 'output window, operand 0, single buffered']
    #allocation4 [shape = 's32[1]{0}', space=sflag, size = 0x4, scoped, tag = 'scoped memory for tpu_custom_call.1']
    %9 = vsyncpa [#allocation4], 0
    // Predicated region
    $region2: #{tpu_custom_call.1} parent=1 // pred_check
      _
    $region3: #{tpu_custom_call.1} parent=1 // pred_check_branch
      %11 = sbr.rel (0) target = $region5
    $region4: #{tpu_custom_call.1} parent=1 // pred_region
      _
    $region5: #{tpu_custom_call.1} parent=1 // pred_fallthru
      _
    // Predicated region
    $region6: #{tpu_custom_call.1} parent=1 // pred_check
      _
    $region7: #{tpu_custom_call.1} parent=1 // pred_check_branch
      %13 = sbr.rel (0) target = $region9
    $region8: #{tpu_custom_call.1} parent=1 // pred_region
      _
    $region9: #{tpu_custom_call.1} parent=1 // pred_fallthru
      _
    // Predicated region
    $region10: #{tpu_custom_call.1} parent=1 // pred_check
      _
    $region11: #{tpu_custom_call.1} parent=1 // pred_check_branch
      %15 = sbr.rel (0) target = $region13
    $region12: #{tpu_custom_call.1} parent=1 // pred_region
      _
    $region13: #{tpu_custom_call.1} parent=1 // pred_fallthru
      _
    // Predicated region
    $region14: #{tpu_custom_call.1} parent=1 // pred_check
      _
    $region15: #{tpu_custom_call.1} parent=1 // pred_check_branch
      %17 = sbr.rel (0) target = $region17
    $region16: #{tpu_custom_call.1} parent=1 // pred_region
      _
    $region17: #{tpu_custom_call.1} parent=1 // pred_fallthru
      _
    %p18 = scmp.eq.s32.totalorder 0, 0
    // Predicated region
    $region18: #{tpu_custom_call.1} parent=1 // pred_check
      %p19 = pneg %p18
    $region19: #{tpu_custom_call.1} parent=1 // pred_check_branch
      %21 = sbr.rel (%p19) target = $region21
    $region20: #{tpu_custom_call.1} parent=1 // pred_region
      %vm22 = vcmask 123904
      %23 = vst.msk [vmem:[#allocation2] sm:$0x3] %vm22, 0.0
    $region21: #{tpu_custom_call.1} parent=1 // pred_fallthru
      _
    %v24 = vld [vmem:[%s0] sm:$0xf]
    %v25 = vld [vmem:[%s1] sm:$0x3]
    %v27 = vperm.slane %v25, 0
    %v28 = vperm.slane %v25, 1
    %v29 = vrot.slane %v28, 6
    %vm30 = vcmask 1041408
    %v31 = vsel %vm30, %v27, %v29
    %v33 = vmul.f32 %v24, %v31
    %v34 = vmax.f32 %v33, 0.0
    %v35 = vld [vmem:[%s2] sm:$0xff]
    %v36 = vld [vmem:[%s2 + $0x8] sm:$0xff]
    %v37 = vld [vmem:[%s2 + $0x10] sm:$0xff]
    %v38 = vld [vmem:[%s2 + $0x18] sm:$0xff]
    %v39 = vld [vmem:[%s2 + $0x20] sm:$0xff]
    %v40 = vld [vmem:[%s2 + $0x28] sm:$0xff]
    %v41 = vld [vmem:[%s2 + $0x30] sm:$0xff]
    %v42 = vld [vmem:[%s2 + $0x38] sm:$0xff]
    %v43 = vld [vmem:[%s2 + $0x40] sm:$0xff]
    %v44 = vld [vmem:[%s2 + $0x48] sm:$0xff]
    %v45 = vld [vmem:[%s2 + $0x50] sm:$0xff]
    %v46 = vld [vmem:[%s2 + $0x58] sm:$0xff]
    %v47 = vld [vmem:[%s2 + $0x60] sm:$0xff]
    %v48 = vld [vmem:[%s2 + $0x68] sm:$0xff]
    %v49 = vld [vmem:[%s2 + $0x70] sm:$0xff]
    %v50 = vld [vmem:[%s2 + $0x78] sm:$0xff]
    %v51 = vld [vmem:[%s2 + $0x80] sm:$0xff]
    %v52 = vld [vmem:[%s2 + $0x88] sm:$0xff]
    %v53 = vld [vmem:[%s2 + $0x90] sm:$0xff]
    %v54 = vld [vmem:[%s2 + $0x98] sm:$0xff]
    %v55 = vld [vmem:[%s2 + $0xa0] sm:$0xff]
    %v56 = vld [vmem:[%s2 + $0xa8] sm:$0xff]
    %v57 = vld [vmem:[%s2 + $0xb0] sm:$0xff]
    %v58 = vld [vmem:[%s2 + $0xb8] sm:$0xff]
    %v59 = vld [vmem:[%s2 + $0xc0] sm:$0xff]
    %v60 = vld [vmem:[%s2 + $0xc8] sm:$0xff]
    %v61 = vld [vmem:[%s2 + $0xd0] sm:$0xff]
    %v62 = vld [vmem:[%s2 + $0xd8] sm:$0xff]
    %v63 = vld [vmem:[%s2 + $0xe0] sm:$0xff]
    %v64 = vld [vmem:[%s2 + $0xe8] sm:$0xff]
    %v65 = vld [vmem:[%s2 + $0xf0] sm:$0xff]
    %v66 = vld [vmem:[%s2 + $0xf8] sm:$0xff]
    %v67 = vld [vmem:[#allocation2] sm:$0x3]
    %69 = vst [vmem:[#allocation1] ss:$4 sm:$0xff] %v34
    %v70 = vld.sshfl [vmem:[#allocation1] sm:$0xff pattern:$0x73625140]
    %v71 = vld.sshfl [vmem:[#allocation1 + $0x8] sm:$0xff pattern:$0x73625140]
    %74 = vmatpush.msra.mxu0 %v50
    %75 = vmatpush.msra.mxu0 %v49
    %76 = vmatpush.msra.mxu0 %v48
    %77 = vmatpush.msra.mxu0 %v47
    %78 = vmatpush.msra.mxu0 %v46
    %79 = vmatpush.msra.mxu0 %v45
    %80 = vmatpush.msra.mxu0 %v44
    %81 = vmatpush.msra.mxu0 %v43
    %82 = vmatpush.msra.mxu0 %v42
    %83 = vmatpush.msra.mxu0 %v41
    %84 = vmatpush.msra.mxu0 %v40
    %85 = vmatpush.msra.mxu0 %v39
    %86 = vmatpush.msra.mxu0 %v38
    %87 = vmatpush.msra.mxu0 %v37
    %88 = vmatpush.msra.mxu0 %v36
    %89 = vmatpush.msra.mxu0 %v35
    %90 = vmatmul.f32.gmra.mxu0 %v70
    %v91 = vpop.f32.mrf.mxu0
    %v92 = vadd.f32 0.0, %v91
    %93 = vdwg.mxu0
    %94 = vmatpush.msra.mxu0 %v66
    %95 = vmatpush.msra.mxu0 %v65
    %96 = vmatpush.msra.mxu0 %v64
    %97 = vmatpush.msra.mxu0 %v63
    %98 = vmatpush.msra.mxu0 %v62
    %99 = vmatpush.msra.mxu0 %v61
    %100 = vmatpush.msra.mxu0 %v60
    %101 = vmatpush.msra.mxu0 %v59
    %102 = vmatpush.msra.mxu0 %v58
    %103 = vmatpush.msra.mxu0 %v57
    %104 = vmatpush.msra.mxu0 %v56
    %105 = vmatpush.msra.mxu0 %v55
    %106 = vmatpush.msra.mxu0 %v54
    %107 = vmatpush.msra.mxu0 %v53
    %108 = vmatpush.msra.mxu0 %v52
    %109 = vmatpush.msra.mxu0 %v51
    %110 = vmatmul.f32.gmra.mxu0 %v71
    %v111 = vpop.f32.mrf.mxu0
    %v112 = vadd.f32 %v92, %v111
    %113 = vdwg.mxu0
    %v114 = vadd.f32 %v67, %v112
    %vm115 = vcmask 123904
    %116 = vst.msk [vmem:[#allocation2] sm:$0x3] %vm115, %v114
    // Predicated region
    $region22: #{tpu_custom_call.1} parent=1 // pred_check
      %p117 = pneg %p18
    $region23: #{tpu_custom_call.1} parent=1 // pred_check_branch
      %119 = sbr.rel (%p117) target = $region25
    $region24: #{tpu_custom_call.1} parent=1 // pred_region
      %v120 = vld [vmem:[#allocation2] sm:$0x3]
      %v121 = vld [vmem:[%s3] sm:$0x1]
      %v123 = vperm.slane %v121, 0
      %v125 = vadd.f32 %v120, %v123
      %126 = vst.msk [vmem:[#allocation3] sm:$0x3] %vm115, %v125
    $region25: #{tpu_custom_call.1} parent=1 // pred_fallthru
      _
    // Predicated region
    $region26: #{tpu_custom_call.1} parent=1 // pred_check
      _
    $region27: #{tpu_custom_call.1} parent=1 // pred_check_branch
      %128 = sbr.rel (0) target = $region29
    $region28: #{tpu_custom_call.1} parent=1 // pred_region
      %130 = vsyncadd [#allocation4], 0
      %s132 = sshll.u32 [#allocation3], 4
      %s133 = int_to_ptr.vmem [resolvable:$true] %s132
      %s134 = sshll.u32 %s4, 4
      %s135 = int_to_ptr.hbm [resolvable:$true] %s134
      %137 = dma.vmem_to_hbm [thread:$0]  %s133, 32, %s135, [#allocation4]
    $region29: #{tpu_custom_call.1} parent=1 // pred_fallthru
      _
    // Predicated region
    $region30: #{tpu_custom_call.1} parent=1 // pred_check
      _
    $region31: #{tpu_custom_call.1} parent=1 // pred_check_branch
      %139 = sbr.rel (0) target = $region33
    $region32: #{tpu_custom_call.1} parent=1 // pred_region
      %141 = dma.done [#allocation4], 32
    $region33: #{tpu_custom_call.1} parent=1 // pred_fallthru
      _
    %142 = vsyncpa [#allocation4], 1

</llo_original>
